<compile_context>
chip_gen: v7x
topology: tpu7x:2x2x1
jax: 0.10.0
libtpu: 0.0.40
codegen_flags: <defaults>
</compile_context>

<pallas_src>
import jax
import jax.numpy as jnp
from jax.experimental import pallas as pl
from jax.experimental.pallas import tpu as pltpu


def _round_up(n, m):
    return ((n + m - 1) // m) * m


def _pick_tile(total, target, align):
    """Largest multiple of `align` that divides `total` and is <= ~target."""
    t = min(_round_up(target, align), total)
    t = max(align, (t // align) * align)
    while total % t != 0:
        t -= align
    return t


def sae_kernel(x_ref, we_ref, be_ref, wd_ref, bd_ref, rec_ref, feat_ref, acc_ref):
    """One (batch-tile, hidden-tile) step of the SAE forward pass."""
    h = pl.program_id(1)

    @pl.when(h == 0)
    def _():
        acc_ref[...] = jnp.zeros_like(acc_ref)

    # encode: x @ W_enc^T (+ b_enc), ReLU.  MXU matmul, f32 accumulation.
    f = jnp.dot(x_ref[...], we_ref[...], preferred_element_type=jnp.float32)
    f = jnp.maximum(f + be_ref[...], 0.0)                       # [tm, th] f32

    # Cast once to the MXU compute dtype; reuse for feature writeback and the
    # decoder matmul (they are the same dtype on the default bf16 path).
    f_c = f.astype(wd_ref.dtype)
    feat_ref[...] = f_c.astype(feat_ref.dtype)

    # decode partial sum over this hidden block: f @ W_dec^T -> f32 accumulator.
    acc_ref[...] += jnp.dot(f_c, wd_ref[...], preferred_element_type=jnp.float32)

    @pl.when(h == pl.num_programs(1) - 1)
    def _():
        rec_ref[...] = (acc_ref[...] + bd_ref[...]).astype(rec_ref.dtype)


def prepare_sae_params(w_enc, b_enc, w_dec, b_dec, *, compute_dtype=jnp.bfloat16):
    """One-time weight prep (do NOT call per forward step).

    torch layout: encode.weight = [H, D], decode.weight = [D, H].
    Returns row-major-matmul layouts, lane-padded to multiples of 128 and cast
    to the MXU compute dtype:
        we_t: [D_pad, H_pad]   be: [1, H_pad] f32
        wd_t: [H_pad, D_pad]   bd: [1, D_pad] f32
    """
    H, D = w_enc.shape
    D_pad = _round_up(D, 128)
    H_pad = _round_up(H, 128)
    we_t = jnp.pad(w_enc.T, ((0, D_pad - D), (0, H_pad - H))).astype(compute_dtype)
    wd_t = jnp.pad(w_dec.T, ((0, H_pad - H), (0, D_pad - D))).astype(compute_dtype)
    be = jnp.pad(b_enc.astype(jnp.float32), (0, H_pad - H)).reshape(1, H_pad)
    bd = jnp.pad(b_dec.astype(jnp.float32), (0, D_pad - D)).reshape(1, D_pad)
    return we_t, be, wd_t, bd


def sae_forward(x, we_t, be, wd_t, bd, *, hidden_size, tile_m=256, block_h=512,
                feat_dtype=None):
    """x: [B, D]. Prepared params from prepare_sae_params.

    Returns (reconstruction [B, D] in x.dtype, features [B, hidden_size]).
    """
    B, D = x.shape
    D_pad, H_pad = we_t.shape
    assert D_pad == _round_up(D, 128), "params were prepared for a different D"
    cdt = we_t.dtype
    if feat_dtype is None:
        feat_dtype = cdt  # bf16 writeback by default: halves the [B, H] HBM stream

    # Batch tile: as large as requested, sublane-aligned (bf16 packs rows in
    # pairs -> use >=16), ragged batches handled by zero padding.
    min_sub = 16 if cdt == jnp.bfloat16 else 8
    tm = max(min_sub, min(_round_up(tile_m, min_sub), _round_up(B, min_sub)))
    B_pad = _round_up(B, tm)
    # Hidden tile: multiple of 128 that divides H_pad (bounds VMEM at large H).
    th = _pick_tile(H_pad, block_h, 128)

    x_p = x
    if B_pad != B or D_pad != D:
        x_p = jnp.pad(x, ((0, B_pad - B), (0, D_pad - D)))
    x_p = x_p.astype(cdt)

    grid = (B_pad // tm, H_pad // th)

    # Explicit scoped-VMEM budget sized from the actual (double-buffered) tiles.
    cbytes = jnp.dtype(cdt).itemsize
    est_vmem = (
        2 * tm * D_pad * cbytes                           # x tile (double-buffered)
        + 2 * D_pad * th * cbytes                         # W_enc^T block
        + 2 * th * D_pad * cbytes                         # W_dec^T block
        + 2 * th * 4 + 2 * D_pad * 4                      # biases
        + 2 * tm * th * jnp.dtype(feat_dtype).itemsize    # features out
        + 2 * tm * D_pad * jnp.dtype(x.dtype).itemsize    # reconstruction out
        + tm * D_pad * 4                                  # f32 accumulator scratch
    )
    vmem_limit = min(int(est_vmem * 1.5) + (1 << 20), 64 * 1024 * 1024)

    rec, feat = pl.pallas_call(
        sae_kernel,
        out_shape=(
            jax.ShapeDtypeStruct((B_pad, D_pad), x.dtype),
            jax.ShapeDtypeStruct((B_pad, H_pad), feat_dtype),
        ),
        grid_spec=pltpu.PrefetchScalarGridSpec(
            num_scalar_prefetch=0,
            grid=grid,
            in_specs=[
                pl.BlockSpec((tm, D_pad), lambda i, h: (i, 0)),    # x tile (resident over h)
                pl.BlockSpec((D_pad, th), lambda i, h: (0, h)),    # W_enc^T block
                pl.BlockSpec((1, th), lambda i, h: (0, h)),        # b_enc block
                pl.BlockSpec((th, D_pad), lambda i, h: (h, 0)),    # W_dec^T block
                pl.BlockSpec((1, D_pad), lambda i, h: (0, 0)),     # b_dec (constant)
            ],
            out_specs=[
                pl.BlockSpec((tm, D_pad), lambda i, h: (i, 0)),    # reconstruction
                pl.BlockSpec((tm, th), lambda i, h: (i, h)),       # features
            ],
            scratch_shapes=[pltpu.VMEM((tm, D_pad), jnp.float32)],  # rec accumulator
        ),
        compiler_params=pltpu.CompilerParams(
            dimension_semantics=("parallel", "arbitrary"),
            vmem_limit_bytes=vmem_limit,
        ),
    )(x_p, we_t, be, wd_t, bd)

    return rec[:B, :D], feat[:B, :hidden_size]


def init_sae_params(key, input_size, hidden_size):
    """Deterministic init mirroring the PyTorch __init__ (tied, column-normalized)."""
    k1, k2 = jax.random.split(key)
    dec_w = jax.random.normal(k1, (input_size, hidden_size), dtype=jnp.float32)
    dec_w = dec_w / jnp.linalg.norm(dec_w, axis=0, keepdims=True)
    scales = jax.random.uniform(k2, (hidden_size,), dtype=jnp.float32) * 0.95 + 0.05
    dec_w = dec_w * scales[None, :]                       # decode.weight: [D, H]
    enc_w = dec_w.T                                       # encode.weight: [H, D]
    b_enc = jnp.zeros((hidden_size,), jnp.float32)
    b_dec = jnp.zeros((input_size,), jnp.float32)
    return enc_w, b_enc, dec_w, b_dec


if __name__ == "__main__":
    B, D, H = 8, 128, 256   # batch, input_size, hidden_size (small demo shapes)

    key = jax.random.PRNGKey(0)
    kx, kp = jax.random.split(key)
    x = jax.random.normal(kx, (B, D), dtype=jnp.float32)
    w_enc, b_enc, w_dec, b_dec = init_sae_params(kp, D, H)

    fwd = jax.jit(sae_forward,
                  static_argnames=("hidden_size", "tile_m", "block_h", "feat_dtype"))

    # Default (performance) path: bf16 MXU operands, f32 accumulation.
    we_bf, be_bf, wd_bf, bd_bf = prepare_sae_params(w_enc, b_enc, w_dec, b_dec)
    rec_bf, feat_bf = fwd(x, we_bf, be_bf, wd_bf, bd_bf, hidden_size=H)
    jax.block_until_ready((rec_bf, feat_bf))

    # f32 path for a tight numerical check against the reference.
    we32, be32, wd32, bd32 = prepare_sae_params(
        w_enc, b_enc, w_dec, b_dec, compute_dtype=jnp.float32)
    rec32, feat32 = fwd(x, we32, be32, wd32, bd32, hidden_size=H)
    jax.block_until_ready((rec32, feat32))

    # Pure-JAX reference (matches the PyTorch forward).
    feat_ref = jnp.maximum(x @ w_enc.T + b_enc, 0.0)
    rec_ref = feat_ref @ w_dec.T + b_dec

    assert jnp.allclose(feat32, feat_ref, atol=1e-5, rtol=1e-5)
    assert jnp.allclose(rec32, rec_ref, atol=1e-5, rtol=1e-5)
    # bf16 operands: expect ~1e-2-level deltas (accumulation stays f32).
    assert jnp.allclose(feat_bf.astype(jnp.float32), feat_ref, atol=5e-2, rtol=5e-2)
    assert jnp.allclose(rec_bf, rec_ref, atol=1e-1, rtol=5e-2)

    # TODO(synk): compute_loss / get_decoder_norms are training-side scalar
    # reductions; they are left to plain JAX outside the forward kernel.
    print("KERNEL_OK")
</pallas_src>

<mosaic_0001>
module attributes {stable_mosaic.version = 11 : i64} {
  func.func @sae_kernel(%arg0: i32, %arg1: i32, %arg2: memref<16x128xbf16, #tpu.memory_space<vmem>>, %arg3: memref<128x256xbf16, #tpu.memory_space<vmem>>, %arg4: memref<1x256xf32, #tpu.memory_space<vmem>>, %arg5: memref<256x128xbf16, #tpu.memory_space<vmem>>, %arg6: memref<1x128xf32, #tpu.memory_space<vmem>>, %arg7: memref<16x128xf32, #tpu.memory_space<vmem>>, %arg8: memref<16x256xbf16, #tpu.memory_space<vmem>>, %arg9: memref<16x128xf32, #tpu.memory_space<vmem>>) attributes {dimension_semantics = [#tpu.dimension_semantics<parallel>, #tpu.dimension_semantics<arbitrary>], iteration_bounds = array<i64: 1, 1>, scalar_prefetch = 0 : i64, scratch_operands = 1 : i64, tpu.core_type = #tpu.core_type<tc>, window_params = [{transform_indices = @transform_0, window_bounds = array<i64: 16, 128>}, {transform_indices = @transform_1, window_bounds = array<i64: 128, 256>}, {transform_indices = @transform_2, window_bounds = array<i64: 1, 256>}, {transform_indices = @transform_3, window_bounds = array<i64: 256, 128>}, {pipeline_mode = #tpu.pipeline_mode<synchronous>, transform_indices = @transform_4, window_bounds = array<i64: 1, 128>}, {transform_indices = @transform_5, window_bounds = array<i64: 16, 128>}, {transform_indices = @transform_6, window_bounds = array<i64: 16, 256>}]} {
    %c0_i32 = arith.constant 0 : i32
    %0 = arith.cmpi eq, %arg1, %c0_i32 : i32
    %1 = arith.extui %0 : i1 to i32
    %c0_i32_0 = arith.constant 0 : i32
    %2 = arith.cmpi ne, %1, %c0_i32_0 : i32
    scf.if %2 {
      %cst_18 = arith.constant 0.000000e+00 : f32
      %21 = vector.broadcast %cst_18 : f32 to vector<16x128xf32>
      %c0_19 = arith.constant 0 : index
      %c0_20 = arith.constant 0 : index
      %22 = vector.load %arg9[%c0_19, %c0_20] : memref<16x128xf32, #tpu.memory_space<vmem>>, vector<16x128xf32>
      tpu.vector_store %arg9[%c0_19, %c0_20], %21 {strides = array<i32>} : memref<16x128xf32, #tpu.memory_space<vmem>>, vector<16x128xf32>,
    } else {
    }
    %c0 = arith.constant 0 : index
    %c0_1 = arith.constant 0 : index
    %3 = vector.load %arg2[%c0, %c0_1] : memref<16x128xbf16, #tpu.memory_space<vmem>>, vector<16x128xbf16>
    %c0_2 = arith.constant 0 : index
    %c0_3 = arith.constant 0 : index
    %4 = vector.load %arg3[%c0_2, %c0_3] : memref<128x256xbf16, #tpu.memory_space<vmem>>, vector<128x256xbf16>
    %cst = arith.constant dense<0.000000e+00> : vector<16x256xf32>
    %5 = tpu.matmul %3, %4, %cst {dimension_numbers = #tpu.dot_dimension_numbers<[1], [0], [0], [1], [0, 0, 1, 1], [], []>} : vector<16x128xbf16>, vector<128x256xbf16>, vector<16x256xf32> -> vector<16x256xf32>
    %c0_4 = arith.constant 0 : index
    %c0_5 = arith.constant 0 : index
    %6 = vector.load %arg4[%c0_4, %c0_5] : memref<1x256xf32, #tpu.memory_space<vmem>>, vector<1x256xf32>
    %7 = vector.broadcast %6 : vector<1x256xf32> to vector<16x256xf32>
    %8 = arith.addf %5, %7 : vector<16x256xf32>
    %cst_6 = arith.constant 0.000000e+00 : f32
    %9 = vector.broadcast %cst_6 : f32 to vector<16x256xf32>
    %10 = arith.maximumf %8, %9 : vector<16x256xf32>
    %11 = arith.truncf %10 : vector<16x256xf32> to vector<16x256xbf16>
    %c0_7 = arith.constant 0 : index
    %c0_8 = arith.constant 0 : index
    %12 = vector.load %arg8[%c0_7, %c0_8] : memref<16x256xbf16, #tpu.memory_space<vmem>>, vector<16x256xbf16>
    tpu.vector_store %arg8[%c0_7, %c0_8], %11 {strides = array<i32>} : memref<16x256xbf16, #tpu.memory_space<vmem>>, vector<16x256xbf16>,
    %c0_9 = arith.constant 0 : index
    %c0_10 = arith.constant 0 : index
    %13 = vector.load %arg9[%c0_9, %c0_10] : memref<16x128xf32, #tpu.memory_space<vmem>>, vector<16x128xf32>
    %c0_11 = arith.constant 0 : index
    %c0_12 = arith.constant 0 : index
    %14 = vector.load %arg5[%c0_11, %c0_12] : memref<256x128xbf16, #tpu.memory_space<vmem>>, vector<256x128xbf16>
    %cst_13 = arith.constant dense<0.000000e+00> : vector<16x128xf32>
    %15 = tpu.matmul %11, %14, %cst_13 {dimension_numbers = #tpu.dot_dimension_numbers<[1], [0], [0], [1], [0, 0, 1, 1], [], []>} : vector<16x256xbf16>, vector<256x128xbf16>, vector<16x128xf32> -> vector<16x128xf32>
    %16 = arith.addf %13, %15 : vector<16x128xf32>
    %c0_14 = arith.constant 0 : index
    %c0_15 = arith.constant 0 : index
    %17 = vector.load %arg9[%c0_14, %c0_15] : memref<16x128xf32, #tpu.memory_space<vmem>>, vector<16x128xf32>
    tpu.vector_store %arg9[%c0_14, %c0_15], %16 {strides = array<i32>} : memref<16x128xf32, #tpu.memory_space<vmem>>, vector<16x128xf32>,
    %c0_i32_16 = arith.constant 0 : i32
    %18 = arith.cmpi eq, %arg1, %c0_i32_16 : i32
    %19 = arith.extui %18 : i1 to i32
    %c0_i32_17 = arith.constant 0 : i32
    %20 = arith.cmpi ne, %19, %c0_i32_17 : i32
    scf.if %20 {
      %c0_18 = arith.constant 0 : index
      %c0_19 = arith.constant 0 : index
      %21 = vector.load %arg9[%c0_18, %c0_19] : memref<16x128xf32, #tpu.memory_space<vmem>>, vector<16x128xf32>
      %c0_20 = arith.constant 0 : index
      %c0_21 = arith.constant 0 : index
      %22 = vector.load %arg6[%c0_20, %c0_21] : memref<1x128xf32, #tpu.memory_space<vmem>>, vector<1x128xf32>
      %23 = vector.broadcast %22 : vector<1x128xf32> to vector<16x128xf32>
      %24 = arith.addf %21, %23 : vector<16x128xf32>
      %c0_22 = arith.constant 0 : index
      %c0_23 = arith.constant 0 : index
      %25 = vector.load %arg7[%c0_22, %c0_23] : memref<16x128xf32, #tpu.memory_space<vmem>>, vector<16x128xf32>
      tpu.vector_store %arg7[%c0_22, %c0_23], %24 {strides = array<i32>} : memref<16x128xf32, #tpu.memory_space<vmem>>, vector<16x128xf32>,
    } else {
    }
    return
  }
  func.func @transform_0(%arg0: i32, %arg1: i32) -> (i32, i32) {
    %c0_i32 = arith.constant 0 : i32
    %c0_i32_0 = arith.constant 0 : i32
    return %arg0, %c0_i32 : i32, i32
  }
  func.func @transform_1(%arg0: i32, %arg1: i32) -> (i32, i32) {
    %c0_i32 = arith.constant 0 : i32
    %c0_i32_0 = arith.constant 0 : i32
    return %c0_i32, %arg1 : i32, i32
  }
  func.func @transform_2(%arg0: i32, %arg1: i32) -> (i32, i32) {
    %c0_i32 = arith.constant 0 : i32
    %c0_i32_0 = arith.constant 0 : i32
    return %c0_i32, %arg1 : i32, i32
  }
  func.func @transform_3(%arg0: i32, %arg1: i32) -> (i32, i32) {
    %c0_i32 = arith.constant 0 : i32
    %c0_i32_0 = arith.constant 0 : i32
    return %arg1, %c0_i32 : i32, i32
  }
  func.func @transform_4(%arg0: i32, %arg1: i32) -> (i32, i32) {
    %c0_i32 = arith.constant 0 : i32
    %c0_i32_0 = arith.constant 0 : i32
    %c0_i32_1 = arith.constant 0 : i32
    return %c0_i32, %c0_i32_0 : i32, i32
  }
  func.func @transform_5(%arg0: i32, %arg1: i32) -> (i32, i32) {
    %c0_i32 = arith.constant 0 : i32
    %c0_i32_0 = arith.constant 0 : i32
    return %arg0, %c0_i32 : i32, i32
  }
  func.func @transform_6(%arg0: i32, %arg1: i32) -> (i32, i32) {
    %c0_i32 = arith.constant 0 : i32
    return %arg0, %arg1 : i32, i32
  }
}

</mosaic_0001>

<llo_original>
// kernel: sae_forward.1
$region0: #{sae_forward.1}
  #allocation0 [shape = 'u32[]', space=smem, size = 0x4, offset = 0x4, fixed_abs, tag = 'smem constant byte address 0x4 - core index']
  #allocation1 [shape = 'u32[144,128]{1,0:T(1,128)}', space=vmem, size = 0x12000, scoped, tag = 'internal scratch']
  #allocation2 [shape = 'f32[16,128]{1,0:T(8,128)}', space=vmem, size = 0x2000, scoped, tag = 'scratch operand']
  %s0 = inlined_call_operand.vmem [shape: bf16[16,128], index: 0, kind: input, shape index: {}]
  %s1 = inlined_call_operand.hbm [shape: bf16[128,256], index: 1, kind: input, shape index: {}]
  %s2 = inlined_call_operand.vmem [shape: f32[1,256], index: 2, kind: input, shape index: {}]
  %s3 = inlined_call_operand.hbm [shape: bf16[256,128], index: 3, kind: input, shape index: {}]
  %s4 = inlined_call_operand.vmem [shape: f32[1,128], index: 4, kind: input, shape index: {}]
  %s5 = inlined_call_operand.vmem [shape: f32[16,128], index: 5, kind: output, shape index: {0}]
  %s6 = inlined_call_operand.vmem [shape: bf16[16,256], index: 6, kind: output, shape index: {1}]
  %7 = xla_tuple %s5, %s6
  %s8 = sld [smem:[#allocation0]]
  $region54: #{sae_forward.1} parent=0
    _
  %s10 = ssub.s32 1, %s8
  %s11 = scalar_select 0, %s10, %s8
  $region1: #{sae_forward.1} parent=0
    #allocation3 [shape = 'u8[65536]{0}', space=vmem, size = 0x10000, scoped, tag = 'input window, operand 1, single buffered']
    #allocation4 [shape = 's32[1]{0}', space=sflag, size = 0x4, scoped, tag = 'scoped memory for sae_forward.1']
    #allocation5 [shape = 'u8[65536]{0}', space=vmem, size = 0x10000, scoped, tag = 'input window, operand 3, single buffered']
    #allocation6 [shape = 's32[1]{0}', space=sflag, size = 0x4, scoped, tag = 'scoped memory for sae_forward.1']
    %12 = vsyncpa [#allocation4], 0
    %13 = vsyncpa [#allocation6], 0
    // Predicated region
    $region2: #{sae_forward.1} parent=1 // pred_check
      _
    $region3: #{sae_forward.1} parent=1 // pred_check_branch
      %15 = sbr.rel (0) target = $region5
    $region4: #{sae_forward.1} parent=1 // pred_region
      _
    $region5: #{sae_forward.1} parent=1 // pred_fallthru
      _
    // Predicated region
    $region6: #{sae_forward.1} parent=1 // pred_check
      _
    $region7: #{sae_forward.1} parent=1 // pred_check_branch
      %17 = sbr.rel (0) target = $region9
    $region8: #{sae_forward.1} parent=1 // pred_region
      %s19 = ssub.s32 2048, 2048
      %20 = vsyncadd [#allocation4], %s19
      %s21 = sshll.u32 [#allocation3], 4
      %s22 = int_to_ptr.vmem [resolvable:$true] %s21
      %27 = dma.hbm_to_vmem [thread:$0]  %s1, 2048, %s22, [#allocation4], 128, 128, 8
    $region9: #{sae_forward.1} parent=1 // pred_fallthru
      _
    // Predicated region
    $region10: #{sae_forward.1} parent=1 // pred_check
      _
    $region11: #{sae_forward.1} parent=1 // pred_check_branch
      %29 = sbr.rel (0) target = $region13
    $region12: #{sae_forward.1} parent=1 // pred_region
      _
    $region13: #{sae_forward.1} parent=1 // pred_fallthru
      _
    // Predicated region
    $region14: #{sae_forward.1} parent=1 // pred_check
      _
    $region15: #{sae_forward.1} parent=1 // pred_check_branch
      %31 = sbr.rel (0) target = $region17
    $region16: #{sae_forward.1} parent=1 // pred_region
      %s33 = ssub.s32 2048, 2048
      %34 = vsyncadd [#allocation6], %s33
      %s35 = sshll.u32 [#allocation5], 4
      %s36 = int_to_ptr.vmem [resolvable:$true] %s35
      %41 = dma.hbm_to_vmem [thread:$0]  %s3, 2048, %s36, [#allocation6], 64, 64, 4
    $region17: #{sae_forward.1} parent=1 // pred_fallthru
      _
    // Predicated region
    $region18: #{sae_forward.1} parent=1 // pred_check
      _
    $region19: #{sae_forward.1} parent=1 // pred_check_branch
      %43 = sbr.rel (0) target = $region21
    $region20: #{sae_forward.1} parent=1 // pred_region
      _
    $region21: #{sae_forward.1} parent=1 // pred_fallthru
      _
    // Predicated region
    $region22: #{sae_forward.1} parent=1 // pred_check
      _
    $region23: #{sae_forward.1} parent=1 // pred_check_branch
      %45 = sbr.rel (0) target = $region25
    $region24: #{sae_forward.1} parent=1 // pred_region
      %46 = dma.done [#allocation4], 2048
    $region25: #{sae_forward.1} parent=1 // pred_fallthru
      _
    // Predicated region
    $region26: #{sae_forward.1} parent=1 // pred_check
      _
    $region27: #{sae_forward.1} parent=1 // pred_check_branch
      %48 = sbr.rel (0) target = $region29
    $region28: #{sae_forward.1} parent=1 // pred_region
      %49 = dma.done [#allocation6], 2048
    $region29: #{sae_forward.1} parent=1 // pred_fallthru
      _
    %p51 = scmp.eq.s32.totalorder 0, 0
    // Predicated region
    $region30: #{sae_forward.1} parent=1 // pred_check
      %p52 = pneg %p51
    $region31: #{sae_forward.1} parent=1 // pred_check_branch
      %54 = sbr.rel (%p52) target = $region33
    $region32: #{sae_forward.1} parent=1 // pred_region
      %55 = vst [vmem:[#allocation2] sm:$0xff] 0.0
      %56 = vst [vmem:[#allocation2 + $0x8] sm:$0xff] 0.0
    $region33: #{sae_forward.1} parent=1 // pred_fallthru
      _
    %v57 = vld [vmem:[%s0] sm:$0xf]
    %v58 = vld [vmem:[%s0 + $0x4] sm:$0xf]
    %v59 = vld [vmem:[#allocation3] sm:$0xff]
    %v60 = vld [vmem:[#allocation3 + $0x8] sm:$0xff]
    %v61 = vld [vmem:[#allocation3 + $0x10] sm:$0xff]
    %v62 = vld [vmem:[#allocation3 + $0x18] sm:$0xff]
    %v63 = vld [vmem:[#allocation3 + $0x20] sm:$0xff]
    %v64 = vld [vmem:[#allocation3 + $0x28] sm:$0xff]
    %v65 = vld [vmem:[#allocation3 + $0x30] sm:$0xff]
    %v66 = vld [vmem:[#allocation3 + $0x38] sm:$0xff]
    %v67 = vld [vmem:[#allocation3 + $0x40] sm:$0xff]
    %v68 = vld [vmem:[#allocation3 + $0x48] sm:$0xff]
    %v69 = vld [vmem:[#allocation3 + $0x50] sm:$0xff]
    %v70 = vld [vmem:[#allocation3 + $0x58] sm:$0xff]
    %v71 = vld [vmem:[#allocation3 + $0x60] sm:$0xff]
    %v72 = vld [vmem:[#allocation3 + $0x68] sm:$0xff]
    %v73 = vld [vmem:[#allocation3 + $0x70] sm:$0xff]
    %v74 = vld [vmem:[#allocation3 + $0x78] sm:$0xff]
    %v75 = vld [vmem:[%s2] sm:$0x3]
    %v77 = vlaneseq
    %v78 = vshrl.u32 %v77, 7
    %v79 = vsub.s32 0, %v78
    %v80 = vrot.slane %v75, %v79
    %v81 = vlaneseq
    %v82 = vshrl.u32 %v81, 7
    %v83 = vsub.s32 1, %v82
    %v84 = vrot.slane %v75, %v83
    %v89 = vunpack.c.l.b16 %v57
    %v90 = vunpack.c.l.b16 %v58
    %v91 = vpack.c.b16 %v90, %v89
    %v109 = vunpack.c.l.b16 %v59
    %v110 = vunpack.c.h.b16 %v59
    %v111 = vunpack.c.l.b16 %v60
    %v112 = vunpack.c.h.b16 %v60
    %v113 = vunpack.c.l.b16 %v61
    %v114 = vunpack.c.h.b16 %v61
    %v115 = vunpack.c.l.b16 %v62
    %v116 = vunpack.c.h.b16 %v62
    %v117 = vunpack.c.l.b16 %v63
    %v118 = vunpack.c.h.b16 %v63
    %v119 = vunpack.c.l.b16 %v64
    %v120 = vunpack.c.h.b16 %v64
    %v121 = vunpack.c.l.b16 %v65
    %v122 = vunpack.c.h.b16 %v65
    %v123 = vunpack.c.l.b16 %v66
    %v124 = vunpack.c.h.b16 %v66
    %v125 = vunpack.c.l.b16 %v67
    %v126 = vunpack.c.h.b16 %v67
    %v127 = vunpack.c.l.b16 %v68
    %v128 = vunpack.c.h.b16 %v68
    %v129 = vunpack.c.l.b16 %v69
    %v130 = vunpack.c.h.b16 %v69
    %v131 = vunpack.c.l.b16 %v70
    %v132 = vunpack.c.h.b16 %v70
    %v133 = vunpack.c.l.b16 %v71
    %v134 = vunpack.c.h.b16 %v71
    %v135 = vunpack.c.l.b16 %v72
    %v136 = vunpack.c.h.b16 %v72
    %v137 = vunpack.c.l.b16 %v73
    %v138 = vunpack.c.h.b16 %v73
    %v139 = vunpack.c.l.b16 %v74
    %v140 = vunpack.c.h.b16 %v74
    %v141 = vpack.c.b16 %v111, %v109
    %v142 = vpack.c.b16 %v112, %v110
    %v143 = vpack.c.b16 %v115, %v113
    %v144 = vpack.c.b16 %v116, %v114
    %v145 = vpack.c.b16 %v119, %v117
    %v146 = vpack.c.b16 %v120, %v118
    %v147 = vpack.c.b16 %v123, %v121
    %v148 = vpack.c.b16 %v124, %v122
    %v149 = vpack.c.b16 %v127, %v125
    %v150 = vpack.c.b16 %v128, %v126
    %v151 = vpack.c.b16 %v131, %v129
    %v152 = vpack.c.b16 %v132, %v130
    %v153 = vpack.c.b16 %v135, %v133
    %v154 = vpack.c.b16 %v136, %v134
    %v155 = vpack.c.b16 %v139, %v137
    %v156 = vpack.c.b16 %v140, %v138
    %173 = vmatprep.subr.bf16.mxu0 %v142
    %174 = vmatpush1.bf16.msra.mxu0 %v141
    %175 = vmatprep.subr.bf16.mxu0 %v144
    %176 = vmatpush1.bf16.msra.mxu0 %v143
    %177 = vmatprep.subr.bf16.mxu0 %v146
    %178 = vmatpush1.bf16.msra.mxu0 %v145
    %179 = vmatprep.subr.bf16.mxu0 %v148
    %180 = vmatpush1.bf16.msra.mxu0 %v147
    %181 = vmatprep.subr.bf16.mxu0 %v150
    %182 = vmatpush1.bf16.msra.mxu0 %v149
    %183 = vmatprep.subr.bf16.mxu0 %v152
    %184 = vmatpush1.bf16.msra.mxu0 %v151
    %185 = vmatprep.subr.bf16.mxu0 %v154
    %186 = vmatpush1.bf16.msra.mxu0 %v153
    %187 = vmatprep.subr.bf16.mxu0 %v156
    %188 = vmatpush1.bf16.msra.mxu0 %v155
    %189 = vmatprep.subr.bf16.mxu0 0
    %190 = vmatpush1.bf16.msra.mxu0 0
    %191 = vmatprep.subr.bf16.mxu0 0
    %192 = vmatpush1.bf16.msra.mxu0 0
    %193 = vmatprep.subr.bf16.mxu0 0
    %194 = vmatpush1.bf16.msra.mxu0 0
    %195 = vmatprep.subr.bf16.mxu0 0
    %196 = vmatpush1.bf16.msra.mxu0 0
    %197 = vmatprep.subr.bf16.mxu0 0
    %198 = vmatpush1.bf16.msra.mxu0 0
    %199 = vmatprep.subr.bf16.mxu0 0
    %200 = vmatpush1.bf16.msra.mxu0 0
    %201 = vmatprep.subr.bf16.mxu0 0
    %202 = vmatpush1.bf16.msra.mxu0 0
    %203 = vmatprep.subr.bf16.mxu0 0
    %204 = vmatpush1.bf16.msra.mxu0 0
    %205 = vmatprep.mubr.bf16.mxu0 0
    %206 = vmatmul.mubr.bf16.gmra.mrb[0].mxu0 %v91
    %v207 = vpop.f32.mrb[0].mxu0
    %v208 = vadd.f32 %v80, %v207
    %v209 = vpop.f32.mrb[0].mxu0
    %v210 = vadd.f32 %v84, %v209
    %v211 = vpop.f32.mrb[0].mxu0
    %v212 = vadd.f32 %v80, %v211
    %v213 = vpop.f32.mrb[0].mxu0
    %v214 = vadd.f32 %v84, %v213
    %215 = vdwg.mxu0
    %v216 = vmax.f32 %v208, 0.0
    %v217 = vmax.f32 %v210, 0.0
    %v218 = vmax.f32 %v212, 0.0
    %v219 = vmax.f32 %v214, 0.0
    %v220 = vpack.c.bf16 %v218, %v216
    %v221 = vpack.c.bf16 %v219, %v217
    %v224 = vunpack.c.l.b16 %v220
    %v225 = vunpack.c.l.b16 %v221
    %v226 = vunpack.c.h.b16 %v220
    %v227 = vunpack.c.h.b16 %v221
    %v228 = vpack.c.b16 %v225, %v224
    %v229 = vpack.c.b16 %v227, %v226
    %232 = vst [vmem:[%s6] sm:$0xff] %v228
    %233 = vst [vmem:[%s6 + $0x8] sm:$0xff] %v229
    %v234 = vld [vmem:[#allocation2] sm:$0xff]
    %v235 = vld [vmem:[#allocation2 + $0x8] sm:$0xff]
    %v236 = vld [vmem:[#allocation5] sm:$0xf]
    %v237 = vld [vmem:[#allocation5 + $0x4] sm:$0xf]
    %v238 = vld [vmem:[#allocation5 + $0x8] sm:$0xf]
    %v239 = vld [vmem:[#allocation5 + $0xc] sm:$0xf]
    %v240 = vld [vmem:[#allocation5 + $0x10] sm:$0xf]
    %v241 = vld [vmem:[#allocation5 + $0x14] sm:$0xf]
    %v242 = vld [vmem:[#allocation5 + $0x18] sm:$0xf]
    %v243 = vld [vmem:[#allocation5 + $0x1c] sm:$0xf]
    %v244 = vld [vmem:[#allocation5 + $0x20] sm:$0xf]
    %v245 = vld [vmem:[#allocation5 + $0x24] sm:$0xf]
    %v246 = vld [vmem:[#allocation5 + $0x28] sm:$0xf]
    %v247 = vld [vmem:[#allocation5 + $0x2c] sm:$0xf]
    %v248 = vld [vmem:[#allocation5 + $0x30] sm:$0xf]
    %v249 = vld [vmem:[#allocation5 + $0x34] sm:$0xf]
    %v250 = vld [vmem:[#allocation5 + $0x38] sm:$0xf]
    %v251 = vld [vmem:[#allocation5 + $0x3c] sm:$0xf]
    %v252 = vld [vmem:[#allocation5 + $0x40] sm:$0xf]
    %v253 = vld [vmem:[#allocation5 + $0x44] sm:$0xf]
    %v254 = vld [vmem:[#allocation5 + $0x48] sm:$0xf]
    %v255 = vld [vmem:[#allocation5 + $0x4c] sm:$0xf]
    %v256 = vld [vmem:[#allocation5 + $0x50] sm:$0xf]
    %v257 = vld [vmem:[#allocation5 + $0x54] sm:$0xf]
    %v258 = vld [vmem:[#allocation5 + $0x58] sm:$0xf]
    %v259 = vld [vmem:[#allocation5 + $0x5c] sm:$0xf]
    %v260 = vld [vmem:[#allocation5 + $0x60] sm:$0xf]
    %v261 = vld [vmem:[#allocation5 + $0x64] sm:$0xf]
    %v262 = vld [vmem:[#allocation5 + $0x68] sm:$0xf]
    %v263 = vld [vmem:[#allocation5 + $0x6c] sm:$0xf]
    %v264 = vld [vmem:[#allocation5 + $0x70] sm:$0xf]
    %v265 = vld [vmem:[#allocation5 + $0x74] sm:$0xf]
    %v266 = vld [vmem:[#allocation5 + $0x78] sm:$0xf]
    %v267 = vld [vmem:[#allocation5 + $0x7c] sm:$0xf]
    %v300 = vunpack.c.l.b16 %v236
    %v301 = vunpack.c.l.b16 %v237
    %v302 = vunpack.c.l.b16 %v238
    %v303 = vunpack.c.l.b16 %v239
    %v304 = vunpack.c.l.b16 %v240
    %v305 = vunpack.c.l.b16 %v241
    %v306 = vunpack.c.l.b16 %v242
    %v307 = vunpack.c.l.b16 %v243
    %v308 = vunpack.c.l.b16 %v244
    %v309 = vunpack.c.l.b16 %v245
    %v310 = vunpack.c.l.b16 %v246
    %v311 = vunpack.c.l.b16 %v247
    %v312 = vunpack.c.l.b16 %v248
    %v313 = vunpack.c.l.b16 %v249
    %v314 = vunpack.c.l.b16 %v250
    %v315 = vunpack.c.l.b16 %v251
    %v316 = vunpack.c.l.b16 %v252
    %v317 = vunpack.c.l.b16 %v253
    %v318 = vunpack.c.l.b16 %v254
    %v319 = vunpack.c.l.b16 %v255
    %v320 = vunpack.c.l.b16 %v256
    %v321 = vunpack.c.l.b16 %v257
    %v322 = vunpack.c.l.b16 %v258
    %v323 = vunpack.c.l.b16 %v259
    %v324 = vunpack.c.l.b16 %v260
    %v325 = vunpack.c.l.b16 %v261
    %v326 = vunpack.c.l.b16 %v262
    %v327 = vunpack.c.l.b16 %v263
    %v328 = vunpack.c.l.b16 %v264
    %v329 = vunpack.c.l.b16 %v265
    %v330 = vunpack.c.l.b16 %v266
    %v331 = vunpack.c.l.b16 %v267
    %v332 = vpack.c.b16 %v301, %v300
    %v333 = vpack.c.b16 %v303, %v302
    %v334 = vpack.c.b16 %v305, %v304
    %v335 = vpack.c.b16 %v307, %v306
    %v336 = vpack.c.b16 %v309, %v308
    %v337 = vpack.c.b16 %v311, %v310
    %v338 = vpack.c.b16 %v313, %v312
    %v339 = vpack.c.b16 %v315, %v314
    %v340 = vpack.c.b16 %v317, %v316
    %v341 = vpack.c.b16 %v319, %v318
    %v342 = vpack.c.b16 %v321, %v320
    %v343 = vpack.c.b16 %v323, %v322
    %v344 = vpack.c.b16 %v325, %v324
    %v345 = vpack.c.b16 %v327, %v326
    %v346 = vpack.c.b16 %v329, %v328
    %v347 = vpack.c.b16 %v331, %v330
    %364 = vmatprep.subr.bf16.mxu0 0
    %365 = vmatpush1.bf16.msra.mxu0 %v332
    %366 = vmatprep.subr.bf16.mxu0 0
    %367 = vmatpush1.bf16.msra.mxu0 %v333
    %368 = vmatprep.subr.bf16.mxu0 0
    %369 = vmatpush1.bf16.msra.mxu0 %v334
    %370 = vmatprep.subr.bf16.mxu0 0
    %371 = vmatpush1.bf16.msra.mxu0 %v335
    %372 = vmatprep.subr.bf16.mxu0 0
    %373 = vmatpush1.bf16.msra.mxu0 %v336
    %374 = vmatprep.subr.bf16.mxu0 0
    %375 = vmatpush1.bf16.msra.mxu0 %v337
    %376 = vmatprep.subr.bf16.mxu0 0
    %377 = vmatpush1.bf16.msra.mxu0 %v338
    %378 = vmatprep.subr.bf16.mxu0 0
    %379 = vmatpush1.bf16.msra.mxu0 %v339
    %380 = vmatprep.subr.bf16.mxu0 0
    %381 = vmatpush1.bf16.msra.mxu0 %v340
    %382 = vmatprep.subr.bf16.mxu0 0
    %383 = vmatpush1.bf16.msra.mxu0 %v341
    %384 = vmatprep.subr.bf16.mxu0 0
    %385 = vmatpush1.bf16.msra.mxu0 %v342
    %386 = vmatprep.subr.bf16.mxu0 0
    %387 = vmatpush1.bf16.msra.mxu0 %v343
    %388 = vmatprep.subr.bf16.mxu0 0
    %389 = vmatpush1.bf16.msra.mxu0 %v344
    %390 = vmatprep.subr.bf16.mxu0 0
    %391 = vmatpush1.bf16.msra.mxu0 %v345
    %392 = vmatprep.subr.bf16.mxu0 0
    %393 = vmatpush1.bf16.msra.mxu0 %v346
    %394 = vmatprep.subr.bf16.mxu0 0
    %395 = vmatpush1.bf16.msra.mxu0 %v347
    %396 = vmatprep.mubr.bf16.mxu0 %v221
    %397 = vmatmul.mubr.bf16.gmra.mrb[0].mxu0 %v220
    %v398 = vpop.f32.mrb[0].mxu0
    %v399 = vadd.f32 0.0, %v398
    %v400 = vpop.f32.mrb[0].mxu0
    %v401 = vpop.f32.mrb[0].mxu0
    %v402 = vadd.f32 0.0, %v401
    %v403 = vpop.f32.mrb[0].mxu0
    %404 = vdwg.mxu0
    %v405 = vadd.f32 %v234, %v399
    %v406 = vadd.f32 %v235, %v402
    %407 = vst [vmem:[#allocation2] sm:$0xff] %v405
    %408 = vst [vmem:[#allocation2 + $0x8] sm:$0xff] %v406
    // Predicated region
    $region34: #{sae_forward.1} parent=1 // pred_check
      %p409 = pneg %p51
    $region35: #{sae_forward.1} parent=1 // pred_check_branch
      %411 = sbr.rel (%p409) target = $region37
    $region36: #{sae_forward.1} parent=1 // pred_region
      %v412 = vld [vmem:[#allocation2] sm:$0xff]
      %v413 = vld [vmem:[#allocation2 + $0x8] sm:$0xff]
      %v414 = vld [vmem:[%s4] sm:$0x1]
      %v416 = vlaneseq
      %v417 = vshrl.u32 %v416, 7
      %v418 = vsub.s32 0, %v417
      %v419 = vrot.slane %v414, %v418
      %v421 = vadd.f32 %v412, %v419
      %v422 = vadd.f32 %v413, %v419
      %423 = vst [vmem:[%s5] sm:$0xff] %v421
      %424 = vst [vmem:[%s5 + $0x8] sm:$0xff] %v422
    $region37: #{sae_forward.1} parent=1 // pred_fallthru
      _
    // Predicated region
    $region38: #{sae_forward.1} parent=1 // pred_check
      _
    $region39: #{sae_forward.1} parent=1 // pred_check_branch
      %426 = sbr.rel (0) target = $region41
    $region40: #{sae_forward.1} parent=1 // pred_region
      _
    $region41: #{sae_forward.1} parent=1 // pred_fallthru
      _
    // Predicated region
    $region42: #{sae_forward.1} parent=1 // pred_check
      _
    $region43: #{sae_forward.1} parent=1 // pred_check_branch
      %428 = sbr.rel (0) target = $region45
    $region44: #{sae_forward.1} parent=1 // pred_region
      _
    $region45: #{sae_forward.1} parent=1 // pred_fallthru
      _
    // Predicated region
    $region46: #{sae_forward.1} parent=1 // pred_check
      _
    $region47: #{sae_forward.1} parent=1 // pred_check_branch
      %430 = sbr.rel (0) target = $region49
    $region48: #{sae_forward.1} parent=1 // pred_region
      _
    $region49: #{sae_forward.1} parent=1 // pred_fallthru
      _
    // Predicated region
    $region50: #{sae_forward.1} parent=1 // pred_check
      _
    $region51: #{sae_forward.1} parent=1 // pred_check_branch
      %432 = sbr.rel (0) target = $region53
    $region52: #{sae_forward.1} parent=1 // pred_region
      _
    $region53: #{sae_forward.1} parent=1 // pred_fallthru
      _
    %433 = vsyncpa [#allocation4], 1
    %434 = vsyncpa [#allocation6], 1

</llo_original>
